<compile_context>
chip_gen: v6e
topology: v6e:2x2x1
jax: 0.10.0
libtpu: 0.0.40
codegen_flags: <defaults>
</compile_context>

<pallas_src>
from functools import partial

import jax
import jax.numpy as jnp
from jax import lax
from jax.experimental import pallas as pl
from jax.experimental.pallas import tpu as pltpu


def _round_up(x, m):
    return (x + m - 1) // m * m


def _pad_to(a, shape):
    """Zero-pad `a` up to `shape`; no-op (no copy) when already that shape."""
    if tuple(a.shape) == tuple(shape):
        return a
    pads = [(0, s - d) for d, s in zip(a.shape, shape)]
    return jnp.pad(a, pads)


def _compiler_params(dimension_semantics, vmem_bytes):
    # Explicit VMEM limit (review): generous headroom but below v7x's 64 MiB
    # physical VMEM per TensorCore.
    limit = int(min(max(2 * vmem_bytes, 16 * 1024 * 1024), 48 * 1024 * 1024))
    return pltpu.CompilerParams(dimension_semantics=dimension_semantics,
                                vmem_limit_bytes=limit)


# ---------------------------------------------------------------------------
# Batched (non-recurrent) projection:  out = x @ w + b
# bf16 operands, f32 accumulation, K-tiled with an f32 VMEM accumulator.
# ---------------------------------------------------------------------------
def _matmul_bias_kernel(x_ref, w_ref, b_ref, o_ref, acc_ref):
    k = pl.program_id(2)

    @pl.when(k == 0)
    def _():
        acc_ref[...] = jnp.zeros_like(acc_ref)

    acc_ref[...] += jnp.dot(x_ref[...], w_ref[...],
                            preferred_element_type=jnp.float32)

    @pl.when(k == pl.num_programs(2) - 1)
    def _():
        o_ref[...] = (acc_ref[...] + b_ref[...]).astype(o_ref.dtype)


def _matmul_bias(x, w, b, *, out_dtype=jnp.float32, tm=512, tn=512, tk=512):
    """(M, K) @ (K, N) + (1, N); lane-dense (16,128)-aligned bf16 tiles."""
    M, K = x.shape
    N = w.shape[1]
    # bf16 operands pack 16 rows per sublane tile; lanes want multiples of 128.
    Mp = _round_up(M, 16)
    Np = _round_up(N, 128)
    Kp = _round_up(K, 128)
    tm = min(tm, Mp)
    tn = min(tn, Np)
    tk = min(tk, Kp)
    Mp = _round_up(Mp, tm)
    Np = _round_up(Np, tn)
    Kp = _round_up(Kp, tk)

    # Padding is skipped (no copy) when already aligned; casts to an identical
    # dtype are no-ops, so pre-padded bf16 params flow straight through.
    xp = _pad_to(x, (Mp, Kp)).astype(jnp.bfloat16)
    wp = _pad_to(w, (Kp, Np)).astype(jnp.bfloat16)
    bp = _pad_to(b.reshape(1, -1), (1, Np)).astype(jnp.float32)

    out_bytes = jnp.dtype(out_dtype).itemsize
    vmem_bytes = (2 * (tm * tk * 2 + tk * tn * 2 + tn * 4 + tm * tn * out_bytes)
                  + tm * tn * 4)
    cost = pl.CostEstimate(
        flops=int(2 * Mp * Np * Kp),
        transcendentals=0,
        bytes_accessed=int(xp.size * 2 + wp.size * 2 + bp.size * 4
                           + Mp * Np * out_bytes))

    out = pl.pallas_call(
        _matmul_bias_kernel,
        out_shape=jax.ShapeDtypeStruct((Mp, Np), out_dtype),
        grid_spec=pltpu.PrefetchScalarGridSpec(
            num_scalar_prefetch=0,
            grid=(Mp // tm, Np // tn, Kp // tk),
            in_specs=[
                pl.BlockSpec((tm, tk), lambda i, j, k: (i, k)),
                pl.BlockSpec((tk, tn), lambda i, j, k: (k, j)),
                pl.BlockSpec((1, tn), lambda i, j, k: (0, j)),
            ],
            out_specs=pl.BlockSpec((tm, tn), lambda i, j, k: (i, j)),
            scratch_shapes=[pltpu.VMEM((tm, tn), jnp.float32)],
        ),
        compiler_params=_compiler_params(("parallel", "parallel", "arbitrary"),
                                         vmem_bytes),
        cost_estimate=cost,
    )(xp, wp, bp)
    return out[:M, :N]


# ---------------------------------------------------------------------------
# Sequential recurrence:  h_t = tanh(pre_t + h_{t-1} @ W_hh)
# Processes t_chunk timesteps per grid step; f32 carry held in VMEM/vregs,
# bf16 MXU operands, bf16 hs writeback.
# ---------------------------------------------------------------------------
def _recurrent_kernel(pre_ref, h0_ref, whh_ref, hs_ref, h_sc, *, t_chunk):
    c = pl.program_id(1)  # time-chunk axis: innermost, sequential ("arbitrary")

    @pl.when(c == 0)
    def _():
        # First chunk of this batch tile: seed from the provided initial state.
        h_sc[...] = h0_ref[...]

    whh = whh_ref[...]  # bf16, resident across the whole chunk

    def step(i, h):
        # h: f32 carry in vregs; cast to bf16 only as the MXU operand.
        acc = jnp.dot(h.astype(jnp.bfloat16), whh,
                      preferred_element_type=jnp.float32)
        h_new = jnp.tanh(pre_ref[i].astype(jnp.float32) + acc)
        hs_ref[i] = h_new.astype(hs_ref.dtype)   # bf16 writeback (halved HBM)
        return h_new

    # Unrolled: LLO sees the whole chunk; h stays in vregs across steps.
    h_last = lax.fori_loop(0, t_chunk, step, h_sc[...], unroll=True)
    h_sc[...] = h_last  # f32 carry to the next time chunk


def _run_recurrence(pre_tbh, h0, w_hh_p, *, t_chunk=32):
    """pre_tbh: (T, B, Hp) bf16 pre-activations (emb@W_ih + b_h, H-padded).
       h0: (B, Hp) f32 initial state.  w_hh_p: (Hp, Hp) bf16 (padded once).
       Returns hs: (Tp, Bp, Hp) bf16 (padded; caller slices what it needs)."""
    T, B, Hp = pre_tbh.shape
    assert w_hh_p.shape == (Hp, Hp)
    Tc = min(t_chunk, T)
    Tp = _round_up(T, Tc)

    # Batch tiling: bf16 sublane packing wants multiples of 16.  Split into
    # >= 2 batch tiles when the batch allows so the "parallel" axis can shard
    # across v7x's two TensorCores; cap the tile near the MXU row count.
    Bp = _round_up(B, 16)
    TB = min(Bp, 256)
    if Bp >= 32:
        TB = min(TB, _round_up(Bp // 2, 16))
    Bp = _round_up(Bp, TB)

    # Zero padding is exact: padded W_hh rows/cols, padded h0 rows and padded
    # pre entries are zero, so padded h entries stay tanh(0) = 0 forever.
    pre_p = _pad_to(pre_tbh, (Tp, Bp, Hp))
    h0_p = _pad_to(h0.astype(jnp.float32), (Bp, Hp))

    grid = (Bp // TB, Tp // Tc)
    vmem_bytes = (2 * (2 * Tc * TB * Hp * 2      # pre + hs chunks (bf16), dbl-buffered
                       + Hp * Hp * 2             # W_hh (bf16)
                       + TB * Hp * 4)            # h0 (f32)
                  + TB * Hp * 4)                 # carry scratch (f32)
    cost = pl.CostEstimate(
        flops=int(2 * Tp * Bp * Hp * Hp),
        transcendentals=int(Tp * Bp * Hp),
        bytes_accessed=int(2 * pre_p.size * 2 + w_hh_p.size * 2 + h0_p.size * 4))

    hs = pl.pallas_call(
        partial(_recurrent_kernel, t_chunk=Tc),
        out_shape=jax.ShapeDtypeStruct((Tp, Bp, Hp), jnp.bfloat16),
        grid_spec=pltpu.PrefetchScalarGridSpec(
            num_scalar_prefetch=0,
            grid=grid,
            in_specs=[
                pl.BlockSpec((Tc, TB, Hp), lambda b, c: (c, b, 0)),  # pre chunk
                pl.BlockSpec((TB, Hp), lambda b, c: (b, 0)),         # h0 tile
                pl.BlockSpec((Hp, Hp), lambda b, c: (0, 0)),         # W_hh
            ],
            out_specs=pl.BlockSpec((Tc, TB, Hp), lambda b, c: (c, b, 0)),
            scratch_shapes=[pltpu.VMEM((TB, Hp), jnp.float32)],
        ),
        compiler_params=_compiler_params(("parallel", "arbitrary"), vmem_bytes),
        cost_estimate=cost,
    )(pre_p, h0_p, w_hh_p)
    return hs


# ---------------------------------------------------------------------------
# Parameters + one-time preprocessing + LM_Base.forward
# ---------------------------------------------------------------------------
def make_params(vocab=64, hidden=32, key=jax.random.PRNGKey(0)):
    k1, k2, k3, k4, k5, k6 = jax.random.split(key, 6)
    s = 0.1
    return {
        "embedding": s * jax.random.normal(k1, (vocab, hidden), jnp.float32),
        "w_ih": s * jax.random.normal(k2, (hidden, hidden), jnp.float32),
        "w_hh": s * jax.random.normal(k3, (hidden, hidden), jnp.float32),
        "b_h": s * jax.random.normal(k4, (1, hidden), jnp.float32),
        "w_out": s * jax.random.normal(k5, (hidden, vocab), jnp.float32),
        "b_out": s * jax.random.normal(k6, (1, vocab), jnp.float32),
    }


def prepare_params(params):
    """One-time preprocessing: fold the input projection into the embedding
    table (pre_table = embedding @ W_ih + b_h) and pre-pad / bf16-cast the
    weights so no per-call padded copies of parameters are materialized."""
    H = params["w_hh"].shape[0]
    V = params["w_out"].shape[1]
    Hp = _round_up(H, 128)
    Vp = _round_up(V, 128)

    # pre_table[v] = embedding[v] @ W_ih + b_h, columns zero-padded to Hp.
    w_ih_p = _pad_to(params["w_ih"], (H, Hp))
    b_h_p = _pad_to(params["b_h"].reshape(1, -1), (1, Hp))
    pre_table = _matmul_bias(params["embedding"], w_ih_p, b_h_p,
                             out_dtype=jnp.bfloat16)            # (V, Hp) bf16

    return {
        "pre_table": pre_table,
        "w_hh_p": _pad_to(params["w_hh"], (Hp, Hp)).astype(jnp.bfloat16),
        "w_out_p": _pad_to(params["w_out"], (Hp, Vp)).astype(jnp.bfloat16),
        "b_out_p": _pad_to(params["b_out"].reshape(1, -1),
                           (1, Vp)).astype(jnp.float32),
        "H": H, "V": V, "Hp": Hp, "Vp": Vp,
    }


def lm_base_forward(prep, x, state=None, *, t_chunk=32):
    """Mirrors LM_Base.forward: x is (B,) or (B, T) token ids.
    Returns (state, y) with y of shape (B, V) or (B, T, V)."""
    single = (x.ndim <= 1)
    tok = x[:, None] if single else x                 # (B, T)
    B, T = tok.shape
    H, V, Hp, Vp = prep["H"], prep["V"], prep["Hp"], prep["Vp"]

    # 1) Input projection folded into the embedding table: one time-major
    #    gather yields the (T, B, Hp) pre-activations directly (no transpose,
    #    no per-call projection matmul).
    pre_tbh = prep["pre_table"][tok.T]                # (T, B, Hp) bf16

    # 2) Serial recurrence (the only sequential kernel on the critical path).
    if state is None:
        h0 = jnp.zeros((B, Hp), jnp.float32)
    else:
        h0 = _pad_to(state.astype(jnp.float32), (B, Hp))
    hs = _run_recurrence(pre_tbh, h0, prep["w_hh_p"], t_chunk=t_chunk)
    Tp, Bp, _ = hs.shape
    new_state = hs[T - 1, :B, :H].astype(jnp.float32)

    # 3) Output projection over ALL (padded) timesteps in one MXU pass; hs is
    #    fed flattened time-major — no full-slab transpose of hidden states.
    logits = _matmul_bias(hs.reshape(Tp * Bp, Hp), prep["w_out_p"],
                          prep["b_out_p"], out_dtype=jnp.float32)
    y = logits.reshape(Tp, Bp, Vp)[:T, :B, :V].transpose(1, 0, 2)   # (B, T, V)
    if single:
        y = y[:, 0, :]
    return new_state, y


# ---------------------------------------------------------------------------
# Pure-JAX (f32) reference for sanity checking
# ---------------------------------------------------------------------------
def _reference(params, x, state=None):
    tok = x if x.ndim > 1 else x[:, None]
    B, T = tok.shape
    H = params["w_hh"].shape[0]
    h = jnp.zeros((B, H), jnp.float32) if state is None else state
    ys = []
    for t in range(T):
        e = params["embedding"][tok[:, t]]
        h = jnp.tanh(e @ params["w_ih"] + h @ params["w_hh"] + params["b_h"])
        ys.append(h @ params["w_out"] + params["b_out"])
    y = jnp.stack(ys, axis=1)
    if x.ndim <= 1:
        y = y[:, 0, :]
    return h, y


if __name__ == "__main__":
    B, T, V, H = 2, 8, 64, 32
    params = make_params(vocab=V, hidden=H, key=jax.random.PRNGKey(0))
    prep = prepare_params(params)
    tokens = jax.random.randint(jax.random.PRNGKey(1), (B, T), 0, V, jnp.int32)

    # train_forward path: state=None
    state, y = lm_base_forward(prep, tokens, state=None)
    state = jax.block_until_ready(state)
    y = jax.block_until_ready(y)

    state_ref, y_ref = _reference(params, tokens)
    assert y.shape == (B, T, V) and state.shape == (B, H)
    # bf16 matmul operands (f32 accumulation) -> loosened tolerance vs f32 ref.
    assert jnp.allclose(y, y_ref, atol=2e-2), "logits mismatch"
    assert jnp.allclose(state, state_ref, atol=2e-2), "state mismatch"

    # single-step branch (x.dim() <= 1)
    state1, y1 = lm_base_forward(prep, tokens[:, 0], state=None)
    jax.block_until_ready(y1)
    assert y1.shape == (B, V) and state1.shape == (B, H)

    # non-None incoming state: split run must reproduce the full run exactly
    # (h only feeds forward through the same bf16 cast in both cases).
    s_half, y_a = lm_base_forward(prep, tokens[:, :4], state=None)
    s_full, y_b = lm_base_forward(prep, tokens[:, 4:], state=s_half)
    jax.block_until_ready(y_b)
    assert jnp.allclose(jnp.concatenate([y_a, y_b], axis=1), y, atol=1e-5), \
        "state-chained logits mismatch"
    assert jnp.allclose(s_full, state, atol=1e-5), "state-chained state mismatch"

    print("KERNEL_OK")
</pallas_src>

<mosaic_0001>
module attributes {stable_mosaic.version = 11 : i64} {
  func.func @_matmul_bias_kernel(%arg0: i32, %arg1: i32, %arg2: i32, %arg3: memref<64x128xbf16, #tpu.memory_space<vmem>>, %arg4: memref<128x128xbf16, #tpu.memory_space<vmem>>, %arg5: memref<1x128xf32, #tpu.memory_space<vmem>>, %arg6: memref<64x128xbf16, #tpu.memory_space<vmem>>, %arg7: memref<64x128xf32, #tpu.memory_space<vmem>>) attributes {dimension_semantics = [#tpu.dimension_semantics<parallel>, #tpu.dimension_semantics<parallel>, #tpu.dimension_semantics<arbitrary>], iteration_bounds = array<i64: 1, 1, 1>, scalar_prefetch = 0 : i64, scratch_operands = 1 : i64, tpu.core_type = #tpu.core_type<tc>, window_params = [{transform_indices = @transform_0, window_bounds = array<i64: 64, 128>}, {transform_indices = @transform_1, window_bounds = array<i64: 128, 128>}, {transform_indices = @transform_2, window_bounds = array<i64: 1, 128>}, {transform_indices = @transform_3, window_bounds = array<i64: 64, 128>}]} {
    %c0_i32 = arith.constant 0 : i32
    %0 = arith.cmpi eq, %arg2, %c0_i32 : i32
    %1 = arith.extui %0 : i1 to i32
    %c0_i32_0 = arith.constant 0 : i32
    %2 = arith.cmpi ne, %1, %c0_i32_0 : i32
    scf.if %2 {
      %cst_10 = arith.constant 0.000000e+00 : f32
      %12 = vector.broadcast %cst_10 : f32 to vector<64x128xf32>
      %c0_11 = arith.constant 0 : index
      %c0_12 = arith.constant 0 : index
      %13 = vector.load %arg7[%c0_11, %c0_12] : memref<64x128xf32, #tpu.memory_space<vmem>>, vector<64x128xf32>
      tpu.vector_store %arg7[%c0_11, %c0_12], %12 {strides = array<i32>} : memref<64x128xf32, #tpu.memory_space<vmem>>, vector<64x128xf32>,
    } else {
    }
    %c0 = arith.constant 0 : index
    %c0_1 = arith.constant 0 : index
    %3 = vector.load %arg7[%c0, %c0_1] : memref<64x128xf32, #tpu.memory_space<vmem>>, vector<64x128xf32>
    %c0_2 = arith.constant 0 : index
    %c0_3 = arith.constant 0 : index
    %4 = vector.load %arg3[%c0_2, %c0_3] : memref<64x128xbf16, #tpu.memory_space<vmem>>, vector<64x128xbf16>
    %c0_4 = arith.constant 0 : index
    %c0_5 = arith.constant 0 : index
    %5 = vector.load %arg4[%c0_4, %c0_5] : memref<128x128xbf16, #tpu.memory_space<vmem>>, vector<128x128xbf16>
    %cst = arith.constant dense<0.000000e+00> : vector<64x128xf32>
    %6 = tpu.matmul %4, %5, %cst {dimension_numbers = #tpu.dot_dimension_numbers<[1], [0], [0], [1], [0, 0, 1, 1], [], []>} : vector<64x128xbf16>, vector<128x128xbf16>, vector<64x128xf32> -> vector<64x128xf32>
    %7 = arith.addf %3, %6 : vector<64x128xf32>
    %c0_6 = arith.constant 0 : index
    %c0_7 = arith.constant 0 : index
    %8 = vector.load %arg7[%c0_6, %c0_7] : memref<64x128xf32, #tpu.memory_space<vmem>>, vector<64x128xf32>
    tpu.vector_store %arg7[%c0_6, %c0_7], %7 {strides = array<i32>} : memref<64x128xf32, #tpu.memory_space<vmem>>, vector<64x128xf32>,
    %c0_i32_8 = arith.constant 0 : i32
    %9 = arith.cmpi eq, %arg2, %c0_i32_8 : i32
    %10 = arith.extui %9 : i1 to i32
    %c0_i32_9 = arith.constant 0 : i32
    %11 = arith.cmpi ne, %10, %c0_i32_9 : i32
    scf.if %11 {
      %c0_10 = arith.constant 0 : index
      %c0_11 = arith.constant 0 : index
      %12 = vector.load %arg7[%c0_10, %c0_11] : memref<64x128xf32, #tpu.memory_space<vmem>>, vector<64x128xf32>
      %c0_12 = arith.constant 0 : index
      %c0_13 = arith.constant 0 : index
      %13 = vector.load %arg5[%c0_12, %c0_13] : memref<1x128xf32, #tpu.memory_space<vmem>>, vector<1x128xf32>
      %14 = vector.broadcast %13 : vector<1x128xf32> to vector<64x128xf32>
      %15 = arith.addf %12, %14 : vector<64x128xf32>
      %16 = arith.truncf %15 : vector<64x128xf32> to vector<64x128xbf16>
      %c0_14 = arith.constant 0 : index
      %c0_15 = arith.constant 0 : index
      %17 = vector.load %arg6[%c0_14, %c0_15] : memref<64x128xbf16, #tpu.memory_space<vmem>>, vector<64x128xbf16>
      tpu.vector_store %arg6[%c0_14, %c0_15], %16 {strides = array<i32>} : memref<64x128xbf16, #tpu.memory_space<vmem>>, vector<64x128xbf16>,
    } else {
    }
    return
  }
  func.func @transform_0(%arg0: i32, %arg1: i32, %arg2: i32) -> (i32, i32) {
    %c0_i32 = arith.constant 0 : i32
    return %arg0, %arg2 : i32, i32
  }
  func.func @transform_1(%arg0: i32, %arg1: i32, %arg2: i32) -> (i32, i32) {
    %c0_i32 = arith.constant 0 : i32
    return %arg2, %arg1 : i32, i32
  }
  func.func @transform_2(%arg0: i32, %arg1: i32, %arg2: i32) -> (i32, i32) {
    %c0_i32 = arith.constant 0 : i32
    %c0_i32_0 = arith.constant 0 : i32
    return %c0_i32, %arg1 : i32, i32
  }
  func.func @transform_3(%arg0: i32, %arg1: i32, %arg2: i32) -> (i32, i32) {
    %c0_i32 = arith.constant 0 : i32
    return %arg0, %arg1 : i32, i32
  }
}

</mosaic_0001>

<llo_original>
// kernel: tpu_custom_call.1
$region0: #{tpu_custom_call.1}
  #allocation0 [shape = 'u32[]', space=smem, size = 0x4, offset = 0x4, fixed_abs, tag = 'smem constant byte address 0x4 - core index']
  #allocation1 [shape = 'u32[144,128]{1,0:T(1,128)}', space=vmem, size = 0x12000, scoped, tag = 'internal scratch']
  #allocation2 [shape = 'f32[64,128]{1,0:T(8,128)}', space=vmem, size = 0x8000, scoped, tag = 'scratch operand']
  %s0 = inlined_call_operand.hbm [shape: bf16[64,128], index: 0, kind: input, shape index: {}]
  %s1 = inlined_call_operand.hbm [shape: bf16[128,128], index: 1, kind: input, shape index: {}]
  %s2 = inlined_call_operand.vmem [shape: f32[1,128], index: 2, kind: input, shape index: {}]
  %s3 = inlined_call_operand.hbm [shape: bf16[64,128], index: 3, kind: output, shape index: {}]
  %s4 = sld [smem:[#allocation0]]
  $region38: #{tpu_custom_call.1} parent=0
    _
  %s6 = ssub.s32 1, %s4
  %s7 = scalar_select 0, %s6, %s4
  $region1: #{tpu_custom_call.1} parent=0
    #allocation3 [shape = 'u8[16384]{0}', space=vmem, size = 0x4000, scoped, tag = 'input window, operand 0, single buffered']
    #allocation4 [shape = 's32[1]{0}', space=sflag, size = 0x4, scoped, tag = 'scoped memory for tpu_custom_call.1']
    #allocation5 [shape = 's32[1]{0}', space=sflag, size = 0x4, scoped, tag = 'scoped memory for tpu_custom_call.1']
    #allocation6 [shape = 'u8[32768]{0}', space=vmem, size = 0x8000, scoped, tag = 'input window, operand 1, single buffered']
    #allocation7 [shape = 's32[1]{0}', space=sflag, size = 0x4, scoped, tag = 'scoped memory for tpu_custom_call.1']
    #allocation8 [shape = 'u8[16384]{0}', space=vmem, size = 0x4000, scoped, tag = 'output window, operand 0, single buffered']
    %8 = vsyncpa [#allocation4], 0
    %9 = vsyncpa [#allocation7], 0
    %10 = vsyncpa [#allocation5], 0
    // Predicated region
    $region2: #{tpu_custom_call.1} parent=1 // pred_check
      _
    $region3: #{tpu_custom_call.1} parent=1 // pred_check_branch
      %12 = sbr.rel (0) target = $region5
    $region4: #{tpu_custom_call.1} parent=1 // pred_region
      %s14 = ssub.s32 512, 512
      %15 = vsyncadd [#allocation4], %s14
      %s16 = sshll.u32 [#allocation3], 4
      %s17 = int_to_ptr.vmem [resolvable:$true] %s16
      %22 = dma.hbm_to_vmem [thread:$0]  %s0, 512, %s17, [#allocation4], 64, 64, 4
    $region5: #{tpu_custom_call.1} parent=1 // pred_fallthru
      _
    // Predicated region
    $region6: #{tpu_custom_call.1} parent=1 // pred_check
      _
    $region7: #{tpu_custom_call.1} parent=1 // pred_check_branch
      %24 = sbr.rel (0) target = $region9
    $region8: #{tpu_custom_call.1} parent=1 // pred_region
      %s26 = ssub.s32 1024, 1024
      %27 = vsyncadd [#allocation7], %s26
      %s28 = sshll.u32 [#allocation6], 4
      %s29 = int_to_ptr.vmem [resolvable:$true] %s28
      %34 = dma.hbm_to_vmem [thread:$0]  %s1, 1024, %s29, [#allocation7], 64, 64, 4
    $region9: #{tpu_custom_call.1} parent=1 // pred_fallthru
      _
    // Predicated region
    $region10: #{tpu_custom_call.1} parent=1 // pred_check
      _
    $region11: #{tpu_custom_call.1} parent=1 // pred_check_branch
      %36 = sbr.rel (0) target = $region13
    $region12: #{tpu_custom_call.1} parent=1 // pred_region
      _
    $region13: #{tpu_custom_call.1} parent=1 // pred_fallthru
      _
    // Predicated region
    $region14: #{tpu_custom_call.1} parent=1 // pred_check
      _
    $region15: #{tpu_custom_call.1} parent=1 // pred_check_branch
      %38 = sbr.rel (0) target = $region17
    $region16: #{tpu_custom_call.1} parent=1 // pred_region
      %39 = dma.done [#allocation4], 512
    $region17: #{tpu_custom_call.1} parent=1 // pred_fallthru
      _
    // Predicated region
    $region18: #{tpu_custom_call.1} parent=1 // pred_check
      _
    $region19: #{tpu_custom_call.1} parent=1 // pred_check_branch
      %41 = sbr.rel (0) target = $region21
    $region20: #{tpu_custom_call.1} parent=1 // pred_region
      %42 = dma.done [#allocation7], 1024
    $region21: #{tpu_custom_call.1} parent=1 // pred_fallthru
      _
    %p44 = scmp.eq.s32.totalorder 0, 0
    // Predicated region
    $region22: #{tpu_custom_call.1} parent=1 // pred_check
      %p45 = pneg %p44
    $region23: #{tpu_custom_call.1} parent=1 // pred_check_branch
      %47 = sbr.rel (%p45) target = $region25
    $region24: #{tpu_custom_call.1} parent=1 // pred_region
      %48 = vst [vmem:[#allocation2] sm:$0xff] 0.0
      %49 = vst [vmem:[#allocation2 + $0x8] sm:$0xff] 0.0
      %50 = vst [vmem:[#allocation2 + $0x10] sm:$0xff] 0.0
      %51 = vst [vmem:[#allocation2 + $0x18] sm:$0xff] 0.0
      %52 = vst [vmem:[#allocation2 + $0x20] sm:$0xff] 0.0
      %53 = vst [vmem:[#allocation2 + $0x28] sm:$0xff] 0.0
      %54 = vst [vmem:[#allocation2 + $0x30] sm:$0xff] 0.0
      %55 = vst [vmem:[#allocation2 + $0x38] sm:$0xff] 0.0
    $region25: #{tpu_custom_call.1} parent=1 // pred_fallthru
      _
    %v56 = vld [vmem:[#allocation2] sm:$0xff]
    %v57 = vld [vmem:[#allocation2 + $0x8] sm:$0xff]
    %v58 = vld [vmem:[#allocation2 + $0x10] sm:$0xff]
    %v59 = vld [vmem:[#allocation2 + $0x18] sm:$0xff]
    %v60 = vld [vmem:[#allocation2 + $0x20] sm:$0xff]
    %v61 = vld [vmem:[#allocation2 + $0x28] sm:$0xff]
    %v62 = vld [vmem:[#allocation2 + $0x30] sm:$0xff]
    %v63 = vld [vmem:[#allocation2 + $0x38] sm:$0xff]
    %v64 = vld [vmem:[#allocation3] sm:$0xf]
    %v65 = vld [vmem:[#allocation3 + $0x4] sm:$0xf]
    %v66 = vld [vmem:[#allocation3 + $0x8] sm:$0xf]
    %v67 = vld [vmem:[#allocation3 + $0xc] sm:$0xf]
    %v68 = vld [vmem:[#allocation3 + $0x10] sm:$0xf]
    %v69 = vld [vmem:[#allocation3 + $0x14] sm:$0xf]
    %v70 = vld [vmem:[#allocation3 + $0x18] sm:$0xf]
    %v71 = vld [vmem:[#allocation3 + $0x1c] sm:$0xf]
    %v72 = vld [vmem:[#allocation6] sm:$0xf]
    %v73 = vld [vmem:[#allocation6 + $0x4] sm:$0xf]
    %v74 = vld [vmem:[#allocation6 + $0x8] sm:$0xf]
    %v75 = vld [vmem:[#allocation6 + $0xc] sm:$0xf]
    %v76 = vld [vmem:[#allocation6 + $0x10] sm:$0xf]
    %v77 = vld [vmem:[#allocation6 + $0x14] sm:$0xf]
    %v78 = vld [vmem:[#allocation6 + $0x18] sm:$0xf]
    %v79 = vld [vmem:[#allocation6 + $0x1c] sm:$0xf]
    %v80 = vld [vmem:[#allocation6 + $0x20] sm:$0xf]
    %v81 = vld [vmem:[#allocation6 + $0x24] sm:$0xf]
    %v82 = vld [vmem:[#allocation6 + $0x28] sm:$0xf]
    %v83 = vld [vmem:[#allocation6 + $0x2c] sm:$0xf]
    %v84 = vld [vmem:[#allocation6 + $0x30] sm:$0xf]
    %v85 = vld [vmem:[#allocation6 + $0x34] sm:$0xf]
    %v86 = vld [vmem:[#allocation6 + $0x38] sm:$0xf]
    %v87 = vld [vmem:[#allocation6 + $0x3c] sm:$0xf]
    %v96 = vunpack.c.l.b16 %v64
    %v97 = vunpack.c.l.b16 %v65
    %v98 = vunpack.c.l.b16 %v66
    %v99 = vunpack.c.l.b16 %v67
    %v100 = vunpack.c.l.b16 %v68
    %v101 = vunpack.c.l.b16 %v69
    %v102 = vunpack.c.l.b16 %v70
    %v103 = vunpack.c.l.b16 %v71
    %v104 = vpack.c.b16 %v97, %v96
    %v105 = vpack.c.b16 %v99, %v98
    %v106 = vpack.c.b16 %v101, %v100
    %v107 = vpack.c.b16 %v103, %v102
    %v128 = vunpack.c.l.b16 %v72
    %v129 = vunpack.c.l.b16 %v73
    %v130 = vunpack.c.l.b16 %v74
    %v131 = vunpack.c.l.b16 %v75
    %v132 = vunpack.c.l.b16 %v76
    %v133 = vunpack.c.l.b16 %v77
    %v134 = vunpack.c.l.b16 %v78
    %v135 = vunpack.c.l.b16 %v79
    %v136 = vunpack.c.l.b16 %v80
    %v137 = vunpack.c.l.b16 %v81
    %v138 = vunpack.c.l.b16 %v82
    %v139 = vunpack.c.l.b16 %v83
    %v140 = vunpack.c.l.b16 %v84
    %v141 = vunpack.c.l.b16 %v85
    %v142 = vunpack.c.l.b16 %v86
    %v143 = vunpack.c.l.b16 %v87
    %v144 = vpack.c.b16 %v129, %v128
    %v145 = vpack.c.b16 %v131, %v130
    %v146 = vpack.c.b16 %v133, %v132
    %v147 = vpack.c.b16 %v135, %v134
    %v148 = vpack.c.b16 %v137, %v136
    %v149 = vpack.c.b16 %v139, %v138
    %v150 = vpack.c.b16 %v141, %v140
    %v151 = vpack.c.b16 %v143, %v142
    %160 = vmatprep.subr.bf16.mxu0 0
    %161 = vmatpush1.bf16.msra.mxu0 %v151
    %162 = vmatprep.subr.bf16.mxu0 0
    %163 = vmatpush1.bf16.msra.mxu0 %v150
    %164 = vmatprep.subr.bf16.mxu0 0
    %165 = vmatpush1.bf16.msra.mxu0 %v149
    %166 = vmatprep.subr.bf16.mxu0 0
    %167 = vmatpush1.bf16.msra.mxu0 %v148
    %168 = vmatprep.subr.bf16.mxu0 0
    %169 = vmatpush1.bf16.msra.mxu0 %v147
    %170 = vmatprep.subr.bf16.mxu0 0
    %171 = vmatpush1.bf16.msra.mxu0 %v146
    %172 = vmatprep.subr.bf16.mxu0 0
    %173 = vmatpush1.bf16.msra.mxu0 %v145
    %174 = vmatprep.subr.bf16.mxu0 0
    %175 = vmatpush1.bf16.msra.mxu0 %v144
    %176 = vmatprep.subr.bf16.mxu0 0
    %177 = vmatpush2.bf16.msra.mxu0 0
    %178 = vmatprep.subr.bf16.mxu0 0
    %179 = vmatpush2.bf16.msra.mxu0 0
    %180 = vmatprep.subr.bf16.mxu0 0
    %181 = vmatpush2.bf16.msra.mxu0 0
    %182 = vmatprep.subr.bf16.mxu0 0
    %183 = vmatpush2.bf16.msra.mxu0 0
    %184 = vmatprep.subr.bf16.mxu0 0
    %185 = vmatpush2.bf16.msra.mxu0 0
    %186 = vmatprep.subr.bf16.mxu0 0
    %187 = vmatpush2.bf16.msra.mxu0 0
    %188 = vmatprep.subr.bf16.mxu0 0
    %189 = vmatpush2.bf16.msra.mxu0 0
    %190 = vmatprep.subr.bf16.mxu0 0
    %191 = vmatpush2.bf16.msra.mxu0 0
    %192 = vmatprep.mubr.bf16.mxu0 0
    %193 = vmatmul.mubr.bf16.gmra.mxu0 %v104
    %v194 = vpop.f32.mrf.mxu0
    %v195 = vadd.f32 0.0, %v194
    %v196 = vpop.f32.mrf.mxu0
    %v197 = vpop.f32.mrf.mxu0
    %v198 = vadd.f32 0.0, %v197
    %v199 = vpop.f32.mrf.mxu0
    %200 = vmatprep.mubr.bf16.mxu0 0
    %201 = vmatmul.mubr.bf16.gmra.mxu0 %v105
    %v202 = vpop.f32.mrf.mxu0
    %v203 = vadd.f32 0.0, %v202
    %v204 = vpop.f32.mrf.mxu0
    %v205 = vpop.f32.mrf.mxu0
    %v206 = vadd.f32 0.0, %v205
    %v207 = vpop.f32.mrf.mxu0
    %208 = vmatprep.mubr.bf16.mxu0 0
    %209 = vmatmul.mubr.bf16.gmra.mxu0 %v106
    %v210 = vpop.f32.mrf.mxu0
    %v211 = vadd.f32 0.0, %v210
    %v212 = vpop.f32.mrf.mxu0
    %v213 = vpop.f32.mrf.mxu0
    %v214 = vadd.f32 0.0, %v213
    %v215 = vpop.f32.mrf.mxu0
    %216 = vmatprep.mubr.bf16.mxu0 0
    %217 = vmatmul.mubr.bf16.gmra.mxu0 %v107
    %v218 = vpop.f32.mrf.mxu0
    %v219 = vadd.f32 0.0, %v218
    %v220 = vpop.f32.mrf.mxu0
    %v221 = vpop.f32.mrf.mxu0
    %v222 = vadd.f32 0.0, %v221
    %v223 = vpop.f32.mrf.mxu0
    %224 = vdwg.mxu0
    %v225 = vadd.f32 %v56, %v195
    %v226 = vadd.f32 %v57, %v198
    %v227 = vadd.f32 %v58, %v203
    %v228 = vadd.f32 %v59, %v206
    %v229 = vadd.f32 %v60, %v211
    %v230 = vadd.f32 %v61, %v214
    %v231 = vadd.f32 %v62, %v219
    %v232 = vadd.f32 %v63, %v222
    %233 = vst [vmem:[#allocation2] sm:$0xff] %v225
    %234 = vst [vmem:[#allocation2 + $0x8] sm:$0xff] %v226
    %235 = vst [vmem:[#allocation2 + $0x10] sm:$0xff] %v227
    %236 = vst [vmem:[#allocation2 + $0x18] sm:$0xff] %v228
    %237 = vst [vmem:[#allocation2 + $0x20] sm:$0xff] %v229
    %238 = vst [vmem:[#allocation2 + $0x28] sm:$0xff] %v230
    %239 = vst [vmem:[#allocation2 + $0x30] sm:$0xff] %v231
    %240 = vst [vmem:[#allocation2 + $0x38] sm:$0xff] %v232
    // Predicated region
    $region26: #{tpu_custom_call.1} parent=1 // pred_check
      %p241 = pneg %p44
    $region27: #{tpu_custom_call.1} parent=1 // pred_check_branch
      %243 = sbr.rel (%p241) target = $region29
    $region28: #{tpu_custom_call.1} parent=1 // pred_region
      %v244 = vld [vmem:[#allocation2] sm:$0xff]
      %v245 = vld [vmem:[#allocation2 + $0x8] sm:$0xff]
      %v246 = vld [vmem:[#allocation2 + $0x10] sm:$0xff]
      %v247 = vld [vmem:[#allocation2 + $0x18] sm:$0xff]
      %v248 = vld [vmem:[#allocation2 + $0x20] sm:$0xff]
      %v249 = vld [vmem:[#allocation2 + $0x28] sm:$0xff]
      %v250 = vld [vmem:[#allocation2 + $0x30] sm:$0xff]
      %v251 = vld [vmem:[#allocation2 + $0x38] sm:$0xff]
      %v252 = vld [vmem:[%s2] sm:$0x1]
      %v254 = vlaneseq
      %v255 = vshrl.u32 %v254, 7
      %v256 = vsub.s32 0, %v255
      %v257 = vrot.slane %v252, %v256
      %v259 = vadd.f32 %v244, %v257
      %v260 = vadd.f32 %v245, %v257
      %v261 = vadd.f32 %v246, %v257
      %v262 = vadd.f32 %v247, %v257
      %v263 = vadd.f32 %v248, %v257
      %v264 = vadd.f32 %v249, %v257
      %v265 = vadd.f32 %v250, %v257
      %v266 = vadd.f32 %v251, %v257
      %v267 = vpack.c.bf16 %v260, %v259
      %v268 = vpack.c.bf16 %v262, %v261
      %v269 = vpack.c.bf16 %v264, %v263
      %v270 = vpack.c.bf16 %v266, %v265
      %v275 = vunpack.c.l.b16 %v267
      %v276 = vunpack.c.h.b16 %v267
      %v277 = vunpack.c.l.b16 %v268
      %v278 = vunpack.c.h.b16 %v268
      %v279 = vunpack.c.l.b16 %v269
      %v280 = vunpack.c.h.b16 %v269
      %v281 = vunpack.c.l.b16 %v270
      %v282 = vunpack.c.h.b16 %v270
      %v283 = vpack.c.b16 %v275, %v275
      %v284 = vpack.c.b16 %v276, %v276
      %v285 = vpack.c.b16 %v277, %v277
      %v286 = vpack.c.b16 %v278, %v278
      %v287 = vpack.c.b16 %v279, %v279
      %v288 = vpack.c.b16 %v280, %v280
      %v289 = vpack.c.b16 %v281, %v281
      %v290 = vpack.c.b16 %v282, %v282
      %299 = vst [vmem:[#allocation8] sm:$0xf] %v283
      %300 = vst [vmem:[#allocation8 + $0x4] sm:$0xf] %v284
      %301 = vst [vmem:[#allocation8 + $0x8] sm:$0xf] %v285
      %302 = vst [vmem:[#allocation8 + $0xc] sm:$0xf] %v286
      %303 = vst [vmem:[#allocation8 + $0x10] sm:$0xf] %v287
      %304 = vst [vmem:[#allocation8 + $0x14] sm:$0xf] %v288
      %305 = vst [vmem:[#allocation8 + $0x18] sm:$0xf] %v289
      %306 = vst [vmem:[#allocation8 + $0x1c] sm:$0xf] %v290
    $region29: #{tpu_custom_call.1} parent=1 // pred_fallthru
      _
    // Predicated region
    $region30: #{tpu_custom_call.1} parent=1 // pred_check
      _
    $region31: #{tpu_custom_call.1} parent=1 // pred_check_branch
      %308 = sbr.rel (0) target = $region33
    $region32: #{tpu_custom_call.1} parent=1 // pred_region
      %s310 = ssub.s32 512, 512
      %311 = vsyncadd [#allocation5], %s310
      %s312 = sshll.u32 [#allocation8], 4
      %s313 = int_to_ptr.vmem [resolvable:$true] %s312
      %318 = dma.vmem_to_hbm [thread:$0]  %s313, 512, %s3, [#allocation5], 64, 64, 4
    $region33: #{tpu_custom_call.1} parent=1 // pred_fallthru
      _
    // Predicated region
    $region34: #{tpu_custom_call.1} parent=1 // pred_check
      _
    $region35: #{tpu_custom_call.1} parent=1 // pred_check_branch
      %320 = sbr.rel (0) target = $region37
    $region36: #{tpu_custom_call.1} parent=1 // pred_region
      %321 = dma.done [#allocation5], 512
    $region37: #{tpu_custom_call.1} parent=1 // pred_fallthru
      _
    %322 = vsyncpa [#allocation4], 1
    %323 = vsyncpa [#allocation7], 1
    %324 = vsyncpa [#allocation5], 1

</llo_original>
